<compile_context>
chip_gen: v5e
topology: v5e:2x2
jax: 0.10.0
libtpu: 0.0.40
codegen_flags: <defaults>
</compile_context>

<pallas_src>
import functools
import math

import jax
import jax.numpy as jnp
from jax.experimental import pallas as pl
from jax.experimental.pallas import tpu as pltpu


def _round_up(x, m):
    return ((x + m - 1) // m) * m


def _conv1d_kernel(*refs, kernel_size, dilation, l_tile, has_halo, use_im2col):
    # refs: x (C_in_p, l_tile) [, halo (C_in_p, halo)], weight, bias, out
    if has_halo:
        x_ref, h_ref, w_ref, b_ref, o_ref = refs
        # Lane-dim concat: main tile + its right halo -> (C_in_p, l_tile+halo).
        xv = jnp.concatenate([x_ref[...], h_ref[...]], axis=1)
    else:
        x_ref, w_ref, b_ref, o_ref = refs
        xv = x_ref[...]

    if use_im2col:
        # Small C_in: fuse all K taps into one MXU matmul.  C_in_p is padded to
        # the sublane pack, so the sublane concat seams are aligned.
        taps = [xv[:, k * dilation: k * dilation + l_tile]
                for k in range(kernel_size)]
        patches = jnp.concatenate(taps, axis=0) if kernel_size > 1 else taps[0]
        acc = jnp.dot(w_ref[...], patches, preferred_element_type=jnp.float32)
    else:
        # Large C_in: K accumulated matmuls, no (K*C_in, l_tile) patches buffer.
        acc = jnp.dot(w_ref[0], xv[:, :l_tile],
                      preferred_element_type=jnp.float32)
        for k in range(1, kernel_size):
            acc = acc + jnp.dot(
                w_ref[k], xv[:, k * dilation: k * dilation + l_tile],
                preferred_element_type=jnp.float32)

    acc = acc + b_ref[...]                       # (C_out, 1) broadcast over lanes
    o_ref[...] = acc.astype(o_ref.dtype)


def conv_norm_forward(x, weight, bias, *, stride=1, padding=None, dilation=1,
                      max_l_tile=1024, compute_dtype=jnp.bfloat16,
                      out_dtype=None, im2col=None, vmem_limit_bytes=None):
    """ConvNorm.forward: Conv1d(x).  x is (B, C_in, L), PyTorch NCL layout."""
    B, C_in, L = x.shape
    C_out, C_in_w, K = weight.shape
    assert C_in == C_in_w
    if padding is None:
        assert K % 2 == 1
        padding = (dilation * (K - 1)) // 2
    # TODO(synk): only stride == 1 (the module default) is implemented.
    assert stride == 1
    out_dtype = x.dtype if out_dtype is None else out_dtype

    halo = dilation * (K - 1)
    L_out = L + 2 * padding - halo
    assert L_out > 0

    # Lane-dense output tiles: always a multiple of 128.
    max_tile = max(128, (max_l_tile // 128) * 128)
    l_tile = min(_round_up(L_out, 128), max_tile)
    if halo:
        l_tile = max(l_tile, _round_up(halo, 128))
    num_tiles = -(-L_out // l_tile)
    lp_out = num_tiles * l_tile

    # Channel padding to the sublane pack (16 for bf16, 8 for f32).
    pack = 16 if jnp.dtype(compute_dtype).itemsize == 2 else 8
    C_in_p = _round_up(C_in, pack)
    if im2col is None:
        im2col = C_in_p < 256
    has_halo = halo > 0

    # One fused pad+cast pass over the input (conv pad, tile pad, channel pad).
    Lp = lp_out + halo
    pad_right = Lp - padding - L
    x_pad = jnp.pad(x.astype(compute_dtype),
                    ((0, 0), (0, C_in_p - C_in), (padding, pad_right)))

    inputs = [x_pad]
    in_specs = [pl.BlockSpec((None, C_in_p, l_tile), lambda b, t: (b, 0, t))]

    if has_halo:
        # Tiny (B, T, C_in_p, halo) array of per-tile halo columns (the first
        # `halo` columns of the next tile).  ~halo/l_tile of the input bytes.
        y = x_pad[:, :, l_tile:]                               # (B,C,(T-1)*lt+halo)
        y = jnp.pad(y, ((0, 0), (0, 0), (0, num_tiles * l_tile - y.shape[-1])))
        y = y.reshape(B, C_in_p, num_tiles, l_tile)[:, :, :, :halo]
        halos = jnp.transpose(y, (0, 2, 1, 3))                 # (B,T,C_in_p,halo)
        inputs.append(halos)
        in_specs.append(pl.BlockSpec((None, None, C_in_p, halo),
                                     lambda b, t: (b, t, 0, 0)))

    # Weight layout depends on the compute path; constant index_map -> resident.
    w_p = jnp.pad(weight, ((0, 0), (0, C_in_p - C_in), (0, 0))).astype(compute_dtype)
    if im2col:
        w2 = jnp.transpose(w_p, (0, 2, 1)).reshape(C_out, K * C_in_p)
        in_specs.append(pl.BlockSpec((C_out, K * C_in_p), lambda b, t: (0, 0)))
    else:
        w2 = jnp.transpose(w_p, (2, 0, 1))                     # (K, C_out, C_in_p)
        in_specs.append(pl.BlockSpec((K, C_out, C_in_p), lambda b, t: (0, 0, 0)))
    inputs.append(w2)

    b2 = bias.reshape(C_out, 1).astype(jnp.float32)
    inputs.append(b2)
    in_specs.append(pl.BlockSpec((C_out, 1), lambda b, t: (0, 0)))

    kernel = functools.partial(_conv1d_kernel, kernel_size=K, dilation=dilation,
                               l_tile=l_tile, has_halo=has_halo,
                               use_im2col=im2col)

    in_item = jnp.dtype(compute_dtype).itemsize
    out_item = jnp.dtype(out_dtype).itemsize
    # Per-step working set (double-buffered tiles + resident weights + temps).
    ws = (2 * C_in_p * (l_tile + halo) * in_item
          + 2 * C_out * l_tile * out_item
          + 2 * (w2.size * in_item + C_out * 4)
          + (K * C_in_p * l_tile * in_item if im2col else 0)
          + C_out * l_tile * 4)
    if vmem_limit_bytes is None:
        vmem_limit_bytes = int(min(64 << 20, max(32 << 20, 2 * ws)))

    cost = pl.CostEstimate(
        flops=2 * B * lp_out * K * C_in_p * C_out,
        transcendentals=0,
        bytes_accessed=(sum(int(a.size) * a.dtype.itemsize for a in inputs)
                        + B * C_out * lp_out * out_item))

    out = pl.pallas_call(
        kernel,
        out_shape=jax.ShapeDtypeStruct((B, C_out, lp_out), out_dtype),
        grid=(B, num_tiles),
        in_specs=in_specs,
        out_specs=pl.BlockSpec((None, C_out, l_tile), lambda b, t: (b, 0, t)),
        compiler_params=pltpu.CompilerParams(
            dimension_semantics=("parallel", "parallel"),
            vmem_limit_bytes=vmem_limit_bytes),
        cost_estimate=cost,
    )(*inputs)

    if lp_out != L_out:
        out = out[:, :, :L_out]                  # only when padding was added
    return out                                    # (B, C_out, L_out), NCL


def init_conv_norm_params(key, in_channels, out_channels, kernel_size):
    """Params matching ConvNorm.__init__ (xavier_uniform weight, Conv1d bias)."""
    k_w, k_b = jax.random.split(key)
    fan_in = in_channels * kernel_size
    fan_out = out_channels * kernel_size
    gain = 1.0  # calculate_gain('linear') == 1
    bound_w = gain * math.sqrt(6.0 / (fan_in + fan_out))
    weight = jax.random.uniform(
        k_w, (out_channels, in_channels, kernel_size),
        minval=-bound_w, maxval=bound_w, dtype=jnp.float32)
    bound_b = 1.0 / math.sqrt(fan_in)
    bias = jax.random.uniform(
        k_b, (out_channels,), minval=-bound_b, maxval=bound_b, dtype=jnp.float32)
    return weight, bias


def _reference_conv(x, weight, bias, *, padding, dilation):
    # Reference with the same bf16 rounding the kernel applies.
    x32 = x.astype(jnp.bfloat16).astype(jnp.float32)
    w32 = weight.astype(jnp.bfloat16).astype(jnp.float32)
    y = jax.lax.conv_general_dilated(
        x32, w32, window_strides=(1,), padding=[(padding, padding)],
        rhs_dilation=(dilation,), dimension_numbers=("NCH", "OIH", "NCH"),
        precision=jax.lax.Precision.HIGHEST,
        preferred_element_type=jnp.float32)
    return y + bias[None, :, None]


if __name__ == "__main__":
    key = jax.random.PRNGKey(0)
    k_x, k_p, k_x2, k_p1 = jax.random.split(key, 4)

    # ConvNorm(in_channels=4, out_channels=8, kernel_size=5) -> padding=2
    B, C_in, C_out, L, K = 2, 4, 8, 16, 5
    x = jax.random.normal(k_x, (B, C_in, L), dtype=jnp.float32)
    weight, bias = init_conv_norm_params(k_p, C_in, C_out, K)

    fwd = jax.jit(lambda xx: conv_norm_forward(xx, weight, bias))
    out = jax.block_until_ready(fwd(x))
    ref = _reference_conv(x, weight, bias, padding=2, dilation=1)
    assert out.shape == (B, C_out, L), out.shape
    assert jnp.allclose(out, ref, atol=1e-2, rtol=1e-2)

    # Multi-tile path with dilation (L tiled, halo side-channel).
    L2, dil = 700, 2
    x2 = jax.random.normal(k_x2, (B, C_in, L2), dtype=jnp.float32)
    out2 = jax.block_until_ready(
        conv_norm_forward(x2, weight, bias, dilation=dil, max_l_tile=256))
    ref2 = _reference_conv(x2, weight, bias, padding=dil * (K - 1) // 2,
                           dilation=dil)
    assert out2.shape == (B, C_out, L2), out2.shape
    assert jnp.allclose(out2, ref2, atol=1e-2, rtol=1e-2)

    # Exercise the per-tap (large-C_in style) accumulation path.
    out3 = jax.block_until_ready(
        conv_norm_forward(x, weight, bias, im2col=False))
    assert jnp.allclose(out3, ref, atol=1e-2, rtol=1e-2)

    # kernel_size=1 (ConvNorm default): no halo, single-tap path.
    weight1, bias1 = init_conv_norm_params(k_p1, C_in, C_out, 1)
    out4 = jax.block_until_ready(conv_norm_forward(x, weight1, bias1))
    ref4 = _reference_conv(x, weight1, bias1, padding=0, dilation=1)
    assert out4.shape == (B, C_out, L), out4.shape
    assert jnp.allclose(out4, ref4, atol=1e-2, rtol=1e-2)

    print("KERNEL_OK")
</pallas_src>

<mosaic_0001>
module attributes {stable_mosaic.version = 11 : i64} {
  func.func @_conv1d_kernel(%arg0: i32, %arg1: i32, %arg2: memref<1x16x128xbf16, #tpu.memory_space<vmem>>, %arg3: memref<1x1x16x4xbf16, #tpu.memory_space<vmem>>, %arg4: memref<8x80xbf16, #tpu.memory_space<vmem>>, %arg5: memref<8x1xf32, #tpu.memory_space<vmem>>, %arg6: memref<1x8x128xf32, #tpu.memory_space<vmem>>) attributes {dimension_semantics = [#tpu.dimension_semantics<parallel>, #tpu.dimension_semantics<parallel>], iteration_bounds = array<i64: 2, 1>, scalar_prefetch = 0 : i64, scratch_operands = 0 : i64, tpu.core_type = #tpu.core_type<tc>, window_params = [{transform_indices = @transform_0, window_bounds = array<i64: 1, 16, 128>}, {transform_indices = @transform_1, window_bounds = array<i64: 1, 1, 16, 4>}, {pipeline_mode = #tpu.pipeline_mode<synchronous>, transform_indices = @transform_2, window_bounds = array<i64: 8, 80>}, {pipeline_mode = #tpu.pipeline_mode<synchronous>, transform_indices = @transform_3, window_bounds = array<i64: 8, 1>}, {transform_indices = @transform_4, window_bounds = array<i64: 1, 8, 128>}]} {
    %c0 = arith.constant 0 : index
    %c0_0 = arith.constant 0 : index
    %c0_1 = arith.constant 0 : index
    %0 = vector.load %arg2[%c0, %c0_0, %c0_1] : memref<1x16x128xbf16, #tpu.memory_space<vmem>>, vector<1x16x128xbf16>
    %1 = vector.shape_cast %0 : vector<1x16x128xbf16> to vector<16x128xbf16>
    %c0_2 = arith.constant 0 : index
    %c0_3 = arith.constant 0 : index
    %c0_4 = arith.constant 0 : index
    %c0_5 = arith.constant 0 : index
    %2 = vector.load %arg3[%c0_2, %c0_3, %c0_4, %c0_5] : memref<1x1x16x4xbf16, #tpu.memory_space<vmem>>, vector<1x1x16x4xbf16>
    %3 = vector.shape_cast %2 : vector<1x1x16x4xbf16> to vector<16x4xbf16>
    %4 = tpu.concatenate %1, %3 in 1 : vector<16x128xbf16>, vector<16x4xbf16> -> vector<16x132xbf16>
    %5 = vector.extract_strided_slice %4 {offsets = [0, 0], sizes = [16, 128], strides = [1, 1]} : vector<16x132xbf16> to vector<16x128xbf16>
    %6 = vector.extract_strided_slice %4 {offsets = [0, 1], sizes = [16, 128], strides = [1, 1]} : vector<16x132xbf16> to vector<16x128xbf16>
    %7 = vector.extract_strided_slice %4 {offsets = [0, 2], sizes = [16, 128], strides = [1, 1]} : vector<16x132xbf16> to vector<16x128xbf16>
    %8 = vector.extract_strided_slice %4 {offsets = [0, 3], sizes = [16, 128], strides = [1, 1]} : vector<16x132xbf16> to vector<16x128xbf16>
    %9 = vector.extract_strided_slice %4 {offsets = [0, 4], sizes = [16, 128], strides = [1, 1]} : vector<16x132xbf16> to vector<16x128xbf16>
    %10 = tpu.concatenate %5, %6, %7, %8, %9 in 0 : vector<16x128xbf16>, vector<16x128xbf16>, vector<16x128xbf16>, vector<16x128xbf16>, vector<16x128xbf16> -> vector<80x128xbf16>
    %c0_6 = arith.constant 0 : index
    %c0_7 = arith.constant 0 : index
    %11 = vector.load %arg4[%c0_6, %c0_7] : memref<8x80xbf16, #tpu.memory_space<vmem>>, vector<8x80xbf16>
    %cst = arith.constant dense<0.000000e+00> : vector<8x128xf32>
    %12 = tpu.matmul %11, %10, %cst {dimension_numbers = #tpu.dot_dimension_numbers<[1], [0], [0], [1], [0, 0, 1, 1], [], []>} : vector<8x80xbf16>, vector<80x128xbf16>, vector<8x128xf32> -> vector<8x128xf32>
    %c0_8 = arith.constant 0 : index
    %c0_9 = arith.constant 0 : index
    %13 = vector.load %arg5[%c0_8, %c0_9] : memref<8x1xf32, #tpu.memory_space<vmem>>, vector<8x1xf32>
    %14 = vector.broadcast %13 : vector<8x1xf32> to vector<8x128xf32>
    %15 = arith.addf %12, %14 : vector<8x128xf32>
    %c0_10 = arith.constant 0 : index
    %c0_11 = arith.constant 0 : index
    %c0_12 = arith.constant 0 : index
    %16 = vector.load %arg6[%c0_10, %c0_11, %c0_12] : memref<1x8x128xf32, #tpu.memory_space<vmem>>, vector<1x8x128xf32>
    %17 = vector.shape_cast %16 : vector<1x8x128xf32> to vector<8x128xf32>
    %18 = vector.shape_cast %15 : vector<8x128xf32> to vector<1x8x128xf32>
    tpu.vector_store %arg6[%c0_10, %c0_11, %c0_12], %18 {strides = array<i32>} : memref<1x8x128xf32, #tpu.memory_space<vmem>>, vector<1x8x128xf32>,
    return
  }
  func.func @transform_0(%arg0: i32, %arg1: i32) -> (i32, i32, i32) {
    %c0_i32 = arith.constant 0 : i32
    %c0_i32_0 = arith.constant 0 : i32
    return %arg0, %c0_i32, %arg1 : i32, i32, i32
  }
  func.func @transform_1(%arg0: i32, %arg1: i32) -> (i32, i32, i32, i32) {
    %c0_i32 = arith.constant 0 : i32
    %c0_i32_0 = arith.constant 0 : i32
    %c0_i32_1 = arith.constant 0 : i32
    return %arg0, %arg1, %c0_i32, %c0_i32_0 : i32, i32, i32, i32
  }
  func.func @transform_2(%arg0: i32, %arg1: i32) -> (i32, i32) {
    %c0_i32 = arith.constant 0 : i32
    %c0_i32_0 = arith.constant 0 : i32
    %c0_i32_1 = arith.constant 0 : i32
    return %c0_i32, %c0_i32_0 : i32, i32
  }
  func.func @transform_3(%arg0: i32, %arg1: i32) -> (i32, i32) {
    %c0_i32 = arith.constant 0 : i32
    %c0_i32_0 = arith.constant 0 : i32
    %c0_i32_1 = arith.constant 0 : i32
    return %c0_i32, %c0_i32_0 : i32, i32
  }
  func.func @transform_4(%arg0: i32, %arg1: i32) -> (i32, i32, i32) {
    %c0_i32 = arith.constant 0 : i32
    %c0_i32_0 = arith.constant 0 : i32
    return %arg0, %c0_i32, %arg1 : i32, i32, i32
  }
}

</mosaic_0001>

<llo_original>
// kernel: _lambda_.1
$region0: #{_lambda_.1}
  #allocation0 [shape = 'u32[]', space=smem, size = 0x4, offset = 0x4, fixed_abs, tag = 'smem constant byte address 0x4 - core index']
  #allocation1 [shape = 'u32[72,128]{1,0:T(1,128)}', space=vmem, size = 0x9000, scoped, tag = 'internal scratch']
  %s0 = inlined_call_operand.vmem [shape: bf16[2,16,132], index: 0, kind: input, shape index: {}]
  %s1 = inlined_call_operand.vmem [shape: bf16[2,1,16,4], index: 1, kind: input, shape index: {}]
  %s2 = inlined_call_operand.vmem [shape: bf16[8,80], index: 2, kind: input, shape index: {}]
  %s3 = inlined_call_operand.vmem [shape: f32[8,1], index: 3, kind: input, shape index: {}]
  %s4 = inlined_call_operand.hbm [shape: f32[2,8,128], index: 4, kind: output, shape index: {}]
  %s5 = sld [smem:[#allocation0]]
  $region90: #{_lambda_.1} parent=0
    _
  %s7 = ssub.s32 1, %s5
  %s8 = scalar_select 0, %s7, %s5
  $region1: #{_lambda_.1} parent=0
    #allocation2 [shape = 'u8[8192]{0}', space=vmem, size = 0x2000, scoped, tag = 'input window, operand 0']
    #allocation3 [shape = 'u8[8192]{0}', space=vmem, size = 0x2000, scoped, tag = 'output window, operand 0']
    #allocation4 [shape = 's32[2]{0}', space=sflag, size = 0x8, scoped, tag = 'scoped memory for _lambda_.1']
    %9 = vsyncpa [#allocation4], 0
    %s10 = scalar_lea.sflag [#allocation4], 1
    %11 = vsyncpa %s10, 0
    loop: start=0, step=1, limit=4
    $region2: #{_lambda_.1} parent=1 // loop_pre_header
      _
    $region3: #{_lambda_.1} parent=1 // loop_header
      %s13 = sphi 0, %s17
      %p14 = scmp.ge.s32.totalorder %s13, 4
      %s20 = sphi 0, %s32
      %s21 = sphi 0, %s28
      %s22 = sphi 0, %s20
      %s23 = sphi 0, %s21
      %s24 = sphi 0, %s22
      %s25 = sphi 0, %s23
      %s37 = sphi 0, %s39
      %s40 = sphi 0, %s37
      %s41 = sphi 0, %s40
      %s57 = sphi 0, %s41
      %s65 = sphi 0, %s67
      %s68 = sphi 0, %s65
      %s69 = sphi 0, %s68
      %s85 = sphi 0, %s69
      %s89 = sphi 0, %s89
      %s91 = sphi 0, %s89
      %s92 = sphi 0, %s91
      %s106 = sphi 0, %s92
      %s110 = sphi 0, %s110
      %s112 = sphi 0, %s110
      %s113 = sphi 0, %s112
      %s127 = sphi 0, %s113
      %s135 = sphi 0, %s137
      %s138 = sphi 0, %s135
      %s139 = sphi 0, %s138
      %s155 = sphi 0, %s139
    $region4: #{_lambda_.1} parent=1 // loop_header_branch
      %16 = sbr.rel (%p14) target = $region8
    $region5: #{_lambda_.1} parent=1 // loop_body
      %s18 = ssub.s32 %s13, 1
      %s19 = ssub.s32 %s13, 2
      %s26 = sadd.s32 1, %s21
      %p27 = scmp.ge.s32.totalorder %s26, 1
      %s28 = scalar_select %p27, 0, %s26
      %s29 = sadd.s32 1, %s20
      %s30 = scalar_select %p27, %s29, %s20
      %p31 = scmp.ge.s32.totalorder %s30, 2
      %s32 = scalar_select %p31, 0, %s30
      %s33 = ssub.s32 %s20, %s32
      %s34 = ssub.s32 %s21, %s28
      %s35 = sor.u32 %s33, %s34
      %p36 = scmp.eq.s32.totalorder %s35, 0
      %s38 = sadd.s32 %s37, 1
      %s39 = scalar_select %p36, %s37, %s38
      %p42 = pneg %p36
      %p43 = scmp.eq.s32.totalorder %s13, 1
      %p44 = por %p42, %p43
      %p45 = scmp.ne.s32.totalorder %s37, %s40
      %p46 = scmp.eq.s32.totalorder %s13, 0
      %p47 = por %p45, %p46
      %p48 = scmp.ne.s32.totalorder %s37, %s40
      %p49 = scmp.eq.s32.totalorder %s18, 1
      %p50 = por %p48, %p49
      %p51 = scmp.ne.s32.totalorder %s40, %s41
      %p52 = scmp.eq.s32.totalorder %s18, 0
      %p53 = por %p51, %p52
      %p54 = scmp.ne.s32.totalorder %s40, %s41
      %p55 = scmp.eq.s32.totalorder %s19, 1
      %p56 = por %p54, %p55
      %p58 = scmp.ne.s32.totalorder %s41, %s57
      %p59 = scmp.eq.s32.totalorder %s19, 0
      %p60 = por %p58, %p59
      %s61 = ssub.s32 %s20, %s32
      %s62 = ssub.s32 %s21, %s28
      %s63 = sor.u32 %s61, %s62
      %p64 = scmp.eq.s32.totalorder %s63, 0
      %s66 = sadd.s32 %s65, 1
      %s67 = scalar_select %p64, %s65, %s66
      %p70 = pneg %p64
      %p71 = scmp.eq.s32.totalorder %s13, 1
      %p72 = por %p70, %p71
      %p73 = scmp.ne.s32.totalorder %s65, %s68
      %p74 = scmp.eq.s32.totalorder %s13, 0
      %p75 = por %p73, %p74
      %p76 = scmp.ne.s32.totalorder %s65, %s68
      %p77 = scmp.eq.s32.totalorder %s18, 1
      %p78 = por %p76, %p77
      %p79 = scmp.ne.s32.totalorder %s68, %s69
      %p80 = scmp.eq.s32.totalorder %s18, 0
      %p81 = por %p79, %p80
      %p82 = scmp.ne.s32.totalorder %s68, %s69
      %p83 = scmp.eq.s32.totalorder %s19, 1
      %p84 = por %p82, %p83
      %p86 = scmp.ne.s32.totalorder %s69, %s85
      %p87 = scmp.eq.s32.totalorder %s19, 0
      %p88 = por %p86, %p87
      %s90 = sadd.s32 %s89, 1
      %p93 = scmp.eq.s32.totalorder %s13, 1
      %p94 = scmp.ne.s32.totalorder %s89, %s91
      %p95 = scmp.eq.s32.totalorder %s13, 0
      %p96 = por %p94, %p95
      %p97 = scmp.ne.s32.totalorder %s89, %s91
      %p98 = scmp.eq.s32.totalorder %s18, 1
      %p99 = por %p97, %p98
      %p100 = scmp.ne.s32.totalorder %s91, %s92
      %p101 = scmp.eq.s32.totalorder %s18, 0
      %p102 = por %p100, %p101
      %p103 = scmp.ne.s32.totalorder %s91, %s92
      %p104 = scmp.eq.s32.totalorder %s19, 1
      %p105 = por %p103, %p104
      %p107 = scmp.ne.s32.totalorder %s92, %s106
      %p108 = scmp.eq.s32.totalorder %s19, 0
      %p109 = por %p107, %p108
      %s111 = sadd.s32 %s110, 1
      %p114 = scmp.eq.s32.totalorder %s13, 1
      %p115 = scmp.ne.s32.totalorder %s110, %s112
      %p116 = scmp.eq.s32.totalorder %s13, 0
      %p117 = por %p115, %p116
      %p118 = scmp.ne.s32.totalorder %s110, %s112
      %p119 = scmp.eq.s32.totalorder %s18, 1
      %p120 = por %p118, %p119
      %p121 = scmp.ne.s32.totalorder %s112, %s113
      %p122 = scmp.eq.s32.totalorder %s18, 0
      %p123 = por %p121, %p122
      %p124 = scmp.ne.s32.totalorder %s112, %s113
      %p125 = scmp.eq.s32.totalorder %s19, 1
      %p126 = por %p124, %p125
      %p128 = scmp.ne.s32.totalorder %s113, %s127
      %p129 = scmp.eq.s32.totalorder %s19, 0
      %p130 = por %p128, %p129
      %s131 = ssub.s32 %s20, %s32
      %s132 = ssub.s32 %s21, %s28
      %s133 = sor.u32 %s131, %s132
      %p134 = scmp.eq.s32.totalorder %s133, 0
      %s136 = sadd.s32 %s135, 1
      %s137 = scalar_select %p134, %s135, %s136
      %p140 = pneg %p134
      %p141 = scmp.eq.s32.totalorder %s13, 1
      %p142 = por %p140, %p141
      %p143 = scmp.ne.s32.totalorder %s135, %s138
      %p144 = scmp.eq.s32.totalorder %s13, 0
      %p145 = por %p143, %p144
      %p146 = scmp.ne.s32.totalorder %s135, %s138
      %p147 = scmp.eq.s32.totalorder %s18, 1
      %p148 = por %p146, %p147
      %p149 = scmp.ne.s32.totalorder %s138, %s139
      %p150 = scmp.eq.s32.totalorder %s18, 0
      %p151 = por %p149, %p150
      %p152 = scmp.ne.s32.totalorder %s138, %s139
      %p153 = scmp.eq.s32.totalorder %s19, 1
      %p154 = por %p152, %p153
      %p156 = scmp.ne.s32.totalorder %s139, %s155
      %p157 = scmp.eq.s32.totalorder %s19, 0
      %p158 = por %p156, %p157
      %p159 = scmp.le.s32.totalorder 1, %s13
      %p160 = scmp.lt.s32.totalorder %s13, 3
      %p161 = pnand %p159, %p160
      %p162 = pneg %p161
      // Predicated region
      $region9: #{_lambda_.1} parent=5 // pred_check
        _
      $region10: #{_lambda_.1} parent=5 // pred_check_branch
        %164 = sbr.rel (%p161) target = $region12
      $region11: #{_lambda_.1} parent=5 // pred_region
        %s165 = ssub.s32 %s13, 1
        // Predicated region
        $region13: #{_lambda_.1} parent=11 // pred_check
          %p166 = pneg %p102
        $region14: #{_lambda_.1} parent=11 // pred_check_branch
          %168 = sbr.rel (%p166) target = $region16
        $region15: #{_lambda_.1} parent=11 // pred_region
          _
        $region16: #{_lambda_.1} parent=11 // pred_fallthru
          _
        // Predicated region
        $region17: #{_lambda_.1} parent=11 // pred_check
          %p169 = pneg %p123
        $region18: #{_lambda_.1} parent=11 // pred_check_branch
          %171 = sbr.rel (%p169) target = $region20
        $region19: #{_lambda_.1} parent=11 // pred_region
          _
        $region20: #{_lambda_.1} parent=11 // pred_fallthru
          _
      $region12: #{_lambda_.1} parent=5 // pred_fallthru
        _
      %p172 = scmp.lt.s32.totalorder %s13, 2
      // Predicated region
      $region21: #{_lambda_.1} parent=5 // pred_check
        %p173 = pneg %p172
      $region22: #{_lambda_.1} parent=5 // pred_check_branch
        %175 = sbr.rel (%p173) target = $region24
      $region23: #{_lambda_.1} parent=5 // pred_region
        // Predicated region
        $region25: #{_lambda_.1} parent=23 // pred_check
          %p176 = pneg %p47
        $region26: #{_lambda_.1} parent=23 // pred_check_branch
          %178 = sbr.rel (%p176) target = $region28
        $region27: #{_lambda_.1} parent=23 // pred_region
          %s179 = sand.u32 %s37, 1
          %s180 = sand.u32 %s37, 1
          %s181 = smul.addr %s180, 8
          %s182 = scalar_lea.vmem [#allocation2], %s181
          %s183 = smul.addr %s20, 4
          %s184 = sadd.s32 %s21, %s183
          %s185 = smul.addr %s184, 4
          %s186 = scalar_lea.vmem %s0, %s185
          // Predicated region
          $region29: #{_lambda_.1} parent=27 // pred_check
            _
          $region30: #{_lambda_.1} parent=27 // pred_check_branch
            %188 = sbr.rel (0) target = $region32
          $region31: #{_lambda_.1} parent=27 // pred_region
            // Predicated region
            $region33: #{_lambda_.1} parent=31 // pred_check
              _
            $region34: #{_lambda_.1} parent=31 // pred_check_branch
              %190 = sbr.rel target = $region36
            $region35: #{_lambda_.1} parent=31 // pred_region
              // Predicated region
              $region48: #{_lambda_.1} parent=35 // pred_check
                _
              $region49: #{_lambda_.1} parent=35 // pred_check_branch
                %208 = sbr.rel (0) target = $region51
              $region50: #{_lambda_.1} parent=35 // pred_region
                loop: start=0, step=1, limit=1
                $region52: #{_lambda_.1} parent=50 // loop_pre_header
                  _
                $region53: #{_lambda_.1} parent=50 // loop_header
                  %s210 = sphi 0, %s214
                  %p211 = scmp.ge.s32.totalorder %s210, 1
                  %s215 = sphi %s186, %s186
                  %s216 = sphi %s182, %s182
                $region54: #{_lambda_.1} parent=50 // loop_header_branch
                  %213 = sbr.rel (%p211) target = $region58
                $region55: #{_lambda_.1} parent=50 // loop_body
                  _
                $region56: #{_lambda_.1} parent=50 // loop_footer
                  %s214 = sadd.s32 1, %s210
                $region57: #{_lambda_.1} parent=50 // loop_footer_branch
                  %209 = sbr.rel target = $region53
                $region58: #{_lambda_.1} parent=50 // loop_exit
                  _
                %s218 = ssub.s32 16, 1
                loop: start=0, step=1, limit=1
                $region59: #{_lambda_.1} parent=50 // loop_pre_header
                  _
                $region60: #{_lambda_.1} parent=50 // loop_header
                  %s220 = sphi 0, %s224
                  %p221 = scmp.ge.s32.totalorder %s220, 1
                  %s225 = sphi %s186, %s186
                  %s226 = sphi %s182, %s182
                $region61: #{_lambda_.1} parent=50 // loop_header_branch
                  %223 = sbr.rel (%p221) target = $region65
                $region62: #{_lambda_.1} parent=50 // loop_body
                  %v227 = vld [vmem:[%s225] sm:%s218]
                  %228 = vst [vmem:[%s226] sm:%s218] %v227
                  %v229 = vld [vmem:[%s225 + $0x8] sm:%s218]
                  %230 = vst [vmem:[%s226 + $0x4] sm:%s218] %v229
                $region63: #{_lambda_.1} parent=50 // loop_footer
                  %s224 = sadd.s32 1, %s220
                $region64: #{_lambda_.1} parent=50 // loop_footer_branch
                  %219 = sbr.rel target = $region60
                $region65: #{_lambda_.1} parent=50 // loop_exit
                  _
              $region51: #{_lambda_.1} parent=35 // pred_fallthru
                _
            $region36: #{_lambda_.1} parent=31 // pred_fallthru
              _
            // Predicated region
            $region37: #{_lambda_.1} parent=31 // pred_check
              _
            $region38: #{_lambda_.1} parent=31 // pred_check_branch
              %192 = sbr.rel (0) target = $region40
            $region39: #{_lambda_.1} parent=31 // pred_region
              %s194 = ssub.s32 16, 1
              loop: start=0, step=1, limit=1
              $region41: #{_lambda_.1} parent=39 // loop_pre_header
                _
              $region42: #{_lambda_.1} parent=39 // loop_header
                %s196 = sphi 0, %s200
                %p197 = scmp.ge.s32.totalorder %s196, 1
                %s201 = sphi %s186, %s186
                %s202 = sphi %s182, %s182
              $region43: #{_lambda_.1} parent=39 // loop_header_branch
                %199 = sbr.rel (%p197) target = $region47
              $region44: #{_lambda_.1} parent=39 // loop_body
                %v203 = vld [vmem:[%s201] sm:%s194]
                %204 = vst [vmem:[%s202] sm:%s194] %v203
                %v205 = vld [vmem:[%s201 + $0x8] sm:%s194]
                %206 = vst [vmem:[%s202 + $0x4] sm:%s194] %v205
              $region45: #{_lambda_.1} parent=39 // loop_footer
                %s200 = sadd.s32 1, %s196
              $region46: #{_lambda_.1} parent=39 // loop_footer_branch
                %195 = sbr.rel target = $region42
              $region47: #{_lambda_.1} parent=39 // loop_exit
                _
            $region40: #{_lambda_.1} parent=31 // pred_fallthru
              _
          $region32: #{_lambda_.1} parent=27 // pred_fallthru
            _
          %231 = vnop
        $region28: #{_lambda_.1} parent=23 // pred_fallthru
          _
        // Predicated region
        $region66: #{_lambda_.1} parent=23 // pred_check
          %p232 = pneg %p75
        $region67: #{_lambda_.1} parent=23 // pred_check_branch
          %234 = sbr.rel (%p232) target = $region69
        $region68: #{_lambda_.1} parent=23 // pred_region
          %p235 = scmp.lt.s32.totalorder %s20, 1
          %s236 = scalar_select %p235, %s20, 1
          %p237 = scmp.lt.s32.totalorder %s21, 0
          %s238 = scalar_select %p237, %s21, 0
          %s239 = smul.addr %s238, 2
          %s240 = smul.addr %s236, 2
          %s241 = sadd.s32 %s239, %s240
          %s242 = smul.addr %s241, 4
          %s243 = scalar_lea.vmem %s1, %s242
        $region69: #{_lambda_.1} parent=23 // pred_fallthru
          _
      $region24: #{_lambda_.1} parent=5 // pred_fallthru
        _
      %p244 = scmp.le.s32.totalorder 1, %s13
      %p245 = scmp.lt.s32.totalorder %s13, 3
      %p246 = pnand %p244, %p245
      %p247 = pneg %p246
      // Predicated region
      $region70: #{_lambda_.1} parent=5 // pred_check
        _
      $region71: #{_lambda_.1} parent=5 // pred_check_branch
        %249 = sbr.rel (%p246) target = $region73
      $region72: #{_lambda_.1} parent=5 // pred_region
        %s250 = ssub.s32 %s13, 1
        %s251 = sand.u32 %s40, 1
        %s252 = sand.u32 %s40, 1
        %s253 = smul.addr %s252, 8
        %s254 = scalar_lea.vmem [#allocation2], %s253
        // Predicated region
        $region74: #{_lambda_.1} parent=72 // pred_check
          %p255 = pneg %p53
        $region75: #{_lambda_.1} parent=72 // pred_check_branch
          %257 = sbr.rel (%p255) target = $region77
        $region76: #{_lambda_.1} parent=72 // pred_region
          _
        $region77: #{_lambda_.1} parent=72 // pred_fallthru
          _
        %s258 = sand.u32 %s40, 1
        %s259 = sand.u32 %s40, 1
        %s260 = smul.addr %s259, 8
        %s261 = scalar_lea.vmem [#allocation2], %s260
        %p262 = pneg %p53
        %p263 = pneg %p50
        %p264 = scmp.lt.s32.totalorder %s22, 1
        %s265 = scalar_select %p264, %s22, 1
        %p266 = scmp.lt.s32.totalorder %s23, 0
        %s267 = scalar_select %p266, %s23, 0
        %s268 = smul.addr %s267, 2
        %s269 = smul.addr %s265, 2
        %s270 = sadd.s32 %s268, %s269
        %s271 = smul.addr %s270, 4
        %s272 = scalar_lea.vmem %s1, %s271
        %p273 = pneg %p81
        %p274 = pneg %p78
        %p275 = pneg %p102
        %p276 = pneg %p99
        %p277 = pneg %p123
        %p278 = pneg %p120
        %p279 = pneg %p151
        %p280 = pneg %p148
        %s281 = sand.u32 %s138, 1
        %s282 = scalar_lea.sflag [#allocation4], %s281
        %s283 = sand.u32 %s138, 1
        %s284 = smul.addr %s283, 8
        %s285 = scalar_lea.vmem [#allocation3], %s284
        %p286 = scmp.lt.s32.totalorder %s22, 1
        %s287 = scalar_select %p286, %s22, 1
        %p288 = scmp.lt.s32.totalorder %s23, 0
        %s289 = scalar_select %p288, %s23, 0
        %s290 = smul.addr %s289, 2
        %s291 = smul.addr %s287, 2
        %s292 = sadd.s32 %s290, %s291
        %s293 = smul.addr %s292, 4
        %s294 = scalar_lea.vmem %s1, %s293
        %v296 = vld [vmem:[%s254] sm:$0xf]
        %v297 = vld [vmem:[%s254 + $0x4] sm:$0xf]
        %v298 = vld [vmem:[%s294] sm:$0xf]
        %v299 = vld [vmem:[%s294 + $0x4] sm:$0xf]
        %v302 = vunpack.c.l.b16 %v296
        %v303 = vunpack.c.l.b16 %v297
        %v304 = vpack.c.b16 %v303, %v302
        %v308 = vunpack.c.l.b16 %v298
        %v309 = vunpack.c.l.b16 %v299
        %v310 = vpack.c.b16 %v309, %v308
        %311 = vrot.lane.b32.xlu0 %v304, 127
        %v312 = vpop.permute.xlu0 %311
        %313 = vrot.lane.b32.xlu0 %v310, 127
        %v314 = vpop.permute.xlu0 %313
        %vm315 = vcmask 1039360
        %v316 = vsel %vm315, %v312, %v314
        %318 = vrot.lane.b32.xlu0 %v304, 126
        %v319 = vpop.permute.xlu0 %318
        %320 = vrot.lane.b32.xlu0 %v310, 126
        %v321 = vpop.permute.xlu0 %320
        %vm322 = vcmask 1031168
        %v323 = vsel %vm322, %v319, %v321
        %325 = vrot.lane.b32.xlu0 %v304, 125
        %v326 = vpop.permute.xlu0 %325
        %327 = vrot.lane.b32.xlu0 %v310, 125
        %v328 = vpop.permute.xlu0 %327
        %vm329 = vcmask 1022976
        %v330 = vsel %vm329, %v326, %v328
        %332 = vrot.lane.b32.xlu0 %v304, 124
        %v333 = vpop.permute.xlu0 %332
        %334 = vrot.lane.b32.xlu0 %v310, 124
        %v335 = vpop.permute.xlu0 %334
        %vm336 = vcmask 1014784
        %v337 = vsel %vm336, %v333, %v335
        %v339 = vld [vmem:[%s2] sm:$0xf]
        %v340 = vld [vmem:[%s3] sm:$0xff]
        %342 = vset.pattern.permute.xlu0 0
        %343 = vperm.xlu0 %342, %v340
        %v344 = vpop.permute.xlu0 %343
        %vm346 = vcmask 654336
        %v348 = vsel %vm346, %v339, 0
        %350 = vmatpush.bf16.msra.mxu0 0
        %351 = vmatpush.bf16.msra.mxu0 0
        %352 = vmatpush.bf16.msra.mxu0 0
        %353 = vmatpush.bf16.msra.mxu0 %v337
        %354 = vmatpush.bf16.msra.mxu0 %v330
        %355 = vmatpush.bf16.msra.mxu0 %v323
        %356 = vmatpush.bf16.msra.mxu0 %v316
        %357 = vmatpush.bf16.msra.mxu0 %v304
        %358 = vmatmul.bf16.gmra.mxu0 %v348
        %v359 = vpop.f32.mrf.mxu0
        %v360 = vadd.f32 %v344, %v359
        %v361 = vpop.f32.mrf.mxu0
        %362 = vdwg.mxu0
        %363 = vst [vmem:[%s285] sm:$0xff] %v360
        %s364 = sand.u32 %s138, 1
        %s365 = scalar_lea.sflag [#allocation4], %s364
        %s366 = sand.u32 %s138, 1
        %s367 = smul.addr %s366, 8
        %s368 = scalar_lea.vmem [#allocation3], %s367
        // Predicated region
        $region78: #{_lambda_.1} parent=72 // pred_check
          %p369 = pneg %p148
        $region79: #{_lambda_.1} parent=72 // pred_check_branch
          %371 = sbr.rel (%p369) target = $region81
        $region80: #{_lambda_.1} parent=72 // pred_region
          %373 = vsyncadd %s365, 0
          %s374 = sadd.s32 %s23, %s22
          %s375 = smul.addr %s374, 8
          %s376 = scalar_lea.hbm %s4, %s375
          %s378 = sshll.u32 %s368, 4
          %s379 = int_to_ptr.vmem [resolvable:$true] %s378
          %s380 = sshll.u32 %s376, 4
          %s381 = int_to_ptr.hbm [resolvable:$true] %s380
          %383 = dma.vmem_to_hbm [thread:$0]  %s379, 128, %s381, %s365
        $region81: #{_lambda_.1} parent=72 // pred_fallthru
          _
      $region73: #{_lambda_.1} parent=5 // pred_fallthru
        _
      %p384 = scmp.le.s32.totalorder 2, %s13
      // Predicated region
      $region82: #{_lambda_.1} parent=5 // pred_check
        %p385 = pneg %p384
      $region83: #{_lambda_.1} parent=5 // pred_check_branch
        %387 = sbr.rel (%p385) target = $region85
      $region84: #{_lambda_.1} parent=5 // pred_region
        %s388 = ssub.s32 %s13, 2
        // Predicated region
        $region86: #{_lambda_.1} parent=84 // pred_check
          %p389 = pneg %p154
        $region87: #{_lambda_.1} parent=84 // pred_check_branch
          %391 = sbr.rel (%p389) target = $region89
        $region88: #{_lambda_.1} parent=84 // pred_region
          %s392 = sand.u32 %s139, 1
          %s393 = scalar_lea.sflag [#allocation4], %s392
          %s394 = sand.u32 %s139, 1
          %s395 = smul.addr %s394, 8
          %s396 = scalar_lea.vmem [#allocation3], %s395
          %398 = dma.done %s393, 128
        $region89: #{_lambda_.1} parent=84 // pred_fallthru
          _
      $region85: #{_lambda_.1} parent=5 // pred_fallthru
        _
    $region6: #{_lambda_.1} parent=1 // loop_footer
      %s17 = sadd.s32 1, %s13
    $region7: #{_lambda_.1} parent=1 // loop_footer_branch
      %12 = sbr.rel target = $region3
    $region8: #{_lambda_.1} parent=1 // loop_exit
      _
    %399 = vsyncpa [#allocation4], 1
    %s400 = scalar_lea.sflag [#allocation4], 1
    %401 = vsyncpa %s400, 1

</llo_original>
